<compile_context>
chip_gen: v6e
topology: v6e:2x2x1
jax: 0.10.0
libtpu: 0.0.40
codegen_flags: <defaults>
</compile_context>

<pallas_src>
import functools

import jax
import jax.numpy as jnp
from jax.experimental import pallas as pl
from jax.experimental.pallas import tpu as pltpu

BN_EPS = 1e-5
LANE = 128
VMEM_BUDGET = 20 * 1024 * 1024   # keep well under v7x's 32 MiB scoped default


def _round_up(x, m):
    return ((x + m - 1) // m) * m


def block_kernel(x_ref, scale_ref, shift_ref,
                 w1_ref, b1_ref, w2_ref, b2_ref,
                 w3_ref, b3_ref, w4_ref, b4_ref,
                 o_ref):
    # ---- short: folded BatchNorm1d (eval) + ReLU --------------------------
    # x may arrive as f32 or bf16; elementwise math stays f32 (v5e has no
    # bf16 VPU path and these ops hide under the memory stalls anyway).
    x = x_ref[...].astype(jnp.float32)
    h = jnp.maximum(x * scale_ref[...] + shift_ref[...], 0.0)

    # ---- density: 4x (Linear [-> ReLU]); bf16 MXU operands, f32 accumulate -
    h = jnp.dot(h.astype(jnp.bfloat16), w1_ref[...],
                preferred_element_type=jnp.float32) + b1_ref[...]
    h = jnp.maximum(h, 0.0)
    h = jnp.dot(h.astype(jnp.bfloat16), w2_ref[...],
                preferred_element_type=jnp.float32) + b2_ref[...]
    h = jnp.maximum(h, 0.0)
    h = jnp.dot(h.astype(jnp.bfloat16), w3_ref[...],
                preferred_element_type=jnp.float32) + b3_ref[...]
    h = jnp.maximum(h, 0.0)
    h = jnp.dot(h.astype(jnp.bfloat16), w4_ref[...],
                preferred_element_type=jnp.float32) + b4_ref[...]
    # Dropout(0.5) in eval mode == identity.

    o_ref[...] = h.astype(o_ref.dtype)


def prepare_params(params):
    """One-time transform: fold BN into (scale, shift); pad only the *hidden*
    feature axes to 128 lanes (x's in_features and the output width stay at
    their true sizes); cast matmul weights to bf16."""
    in_f, h1 = params["w1"].shape
    h2 = params["w2"].shape[1]
    h3 = params["w3"].shape[1]
    out_f = params["w4"].shape[1]
    h1p, h2p, h3p = (_round_up(d, LANE) for d in (h1, h2, h3))

    # Fold BatchNorm (eval): y = (x - mean) * rsqrt(var+eps) * gamma + beta
    scale = params["gamma"] * jax.lax.rsqrt(params["var"] + BN_EPS)
    shift = params["beta"] - params["mean"] * scale

    def pad2(a, r, c):
        return jnp.pad(a, ((0, r - a.shape[0]), (0, c - a.shape[1])))

    return {
        "scale": scale.astype(jnp.float32),                 # (1, in_f) no pad
        "shift": shift.astype(jnp.float32),
        "w1": pad2(params["w1"], in_f, h1p).astype(jnp.bfloat16),  # K = true in_f
        "b1": pad2(params["b1"], 1, h1p).astype(jnp.float32),
        "w2": pad2(params["w2"], h1p, h2p).astype(jnp.bfloat16),
        "b2": pad2(params["b2"], 1, h2p).astype(jnp.float32),
        "w3": pad2(params["w3"], h2p, h3p).astype(jnp.bfloat16),
        "b3": pad2(params["b3"], 1, h3p).astype(jnp.float32),
        "w4": pad2(params["w4"], h3p, out_f).astype(jnp.bfloat16),  # N = true out_f
        "b4": params["b4"].astype(jnp.float32),                     # (1, out_f)
    }


def _choose_block_m(B, in_itemsize, in_f, out_f, max_hidden_pad, max_block_m):
    # VMEM budget per row: double-buffered x & out tiles + ~3 live f32
    # 128-lane intermediates.  Keeps big tiles portable to v7x's 64 MiB VMEM.
    per_row = 2 * in_f * in_itemsize + 2 * out_f * 4 + 3 * max_hidden_pad * 4
    fit = max(8, (VMEM_BUDGET // max(per_row, 1)) // 8 * 8)
    cap = min(max_block_m, fit)
    if B <= 16:
        return _round_up(B, 8)          # too small to split usefully
    # Keep grid >= 2 steps so both v7x TensorCores get work.
    half = _round_up((B + 1) // 2, 8)
    return max(8, min(cap, half))


@functools.partial(jax.jit, static_argnames=("max_block_m",))
def block_forward(x, prep, max_block_m=2048):
    """x: (B, in_features) float32 or bfloat16. prep: output of prepare_params.
    Batch pad, pallas_call and the trailing slice are all inside one jit."""
    B, in_f = x.shape
    h1p = prep["w1"].shape[1]
    h2p = prep["w2"].shape[1]
    h3p = prep["w3"].shape[1]
    out_f = prep["w4"].shape[1]

    bm = _choose_block_m(B, x.dtype.itemsize, in_f, out_f,
                         max(h1p, h2p, h3p), max_block_m)
    B_pad = _round_up(B, bm)
    x_p = x if B_pad == B else jnp.pad(x, ((0, B_pad - B), (0, 0)))
    grid = (B_pad // bm,)

    args = (x_p, prep["scale"], prep["shift"],
            prep["w1"], prep["b1"], prep["w2"], prep["b2"],
            prep["w3"], prep["b3"], prep["w4"], prep["b4"])

    # Batch-tiled x / out; weights, biases and BN vectors are resident
    # (constant index_map -> DMA'd once, revisited every grid step).
    def resident(a):
        # TODO(synk): pipeline_mode=pl.Buffered(1) would drop the redundant
        # second buffer for these grid-invariant arrays (minor VMEM hygiene).
        return pl.BlockSpec(a.shape, lambda i: (0, 0))

    in_specs = [pl.BlockSpec((bm, in_f), lambda i: (i, 0))]
    in_specs += [resident(a) for a in args[1:]]
    out_specs = pl.BlockSpec((bm, out_f), lambda i: (i, 0))

    flops = 2 * B_pad * (in_f * h1p + h1p * h2p + h2p * h3p + h3p * out_f)
    bytes_accessed = (
        x_p.size * x_p.dtype.itemsize + B_pad * out_f * 4
        + sum(prep[f"w{i}"].size * 2 + prep[f"b{i}"].size * 4
              for i in (1, 2, 3, 4))
        + prep["scale"].size * 4 + prep["shift"].size * 4)

    out = pl.pallas_call(
        block_kernel,
        out_shape=jax.ShapeDtypeStruct((B_pad, out_f), jnp.float32),
        grid=grid,
        in_specs=in_specs,
        out_specs=out_specs,
        compiler_params=pltpu.CompilerParams(
            dimension_semantics=("parallel",)),
        cost_estimate=pl.CostEstimate(
            flops=flops, transcendentals=0, bytes_accessed=bytes_accessed),
    )(*args)
    return out if B_pad == B else out[:B]


def init_params(key, in_features, hidden1, hidden2, hidden3, out_features):
    """Deterministic synthetic parameters (PyTorch Linear weight (out,in) is
    stored transposed as (in,out) for the kernel)."""
    ks = jax.random.split(key, 8)

    def lin(kw, kb, fan_in, fan_out):
        bound = 1.0 / jnp.sqrt(fan_in)
        w = jax.random.uniform(kw, (fan_in, fan_out), jnp.float32, -bound, bound)
        b = jax.random.uniform(kb, (1, fan_out), jnp.float32, -bound, bound)
        return w, b

    w1, b1 = lin(ks[0], ks[1], in_features, hidden1)
    w2, b2 = lin(ks[2], ks[3], hidden1, hidden2)
    w3, b3 = lin(ks[4], ks[5], hidden2, hidden3)
    w4, b4 = lin(ks[6], ks[7], hidden3, out_features)

    return {
        # BatchNorm1d defaults: gamma=1, beta=0, running_mean=0, running_var=1
        "gamma": jnp.ones((1, in_features), jnp.float32),
        "beta": jnp.zeros((1, in_features), jnp.float32),
        "mean": jnp.zeros((1, in_features), jnp.float32),
        "var": jnp.ones((1, in_features), jnp.float32),
        "w1": w1, "b1": b1,
        "w2": w2, "b2": b2,
        "w3": w3, "b3": b3,
        "w4": w4, "b4": b4,
    }


if __name__ == "__main__":
    B, IN, H1, H2, H3, OUT = 8, 32, 64, 64, 32, 16

    key = jax.random.PRNGKey(0)
    kx, kp = jax.random.split(key)
    x = jax.random.normal(kx, (B, IN), jnp.float32)
    params = init_params(kp, IN, H1, H2, H3, OUT)
    prep = prepare_params(params)

    out = block_forward(x, prep)
    jax.block_until_ready(out)

    # sanity check against plain-JAX f32 reference (kernel matmuls are bf16)
    def ref(x, p):
        h = (x - p["mean"]) * jax.lax.rsqrt(p["var"] + BN_EPS) * p["gamma"] + p["beta"]
        h = jnp.maximum(h, 0.0)
        h = jnp.maximum(h @ p["w1"] + p["b1"], 0.0)
        h = jnp.maximum(h @ p["w2"] + p["b2"], 0.0)
        h = jnp.maximum(h @ p["w3"] + p["b3"], 0.0)
        return h @ p["w4"] + p["b4"]

    expected = ref(x, params)
    assert out.shape == (B, OUT)
    assert jnp.allclose(out, expected, atol=5e-2, rtol=5e-2), (
        float(jnp.max(jnp.abs(out - expected))))
    print("KERNEL_OK")
</pallas_src>

<mosaic_0001>
module attributes {stable_mosaic.version = 11 : i64} {
  func.func @block_kernel(%arg0: i32, %arg1: memref<8x32xf32, #tpu.memory_space<vmem>>, %arg2: memref<1x32xf32, #tpu.memory_space<vmem>>, %arg3: memref<1x32xf32, #tpu.memory_space<vmem>>, %arg4: memref<32x128xbf16, #tpu.memory_space<vmem>>, %arg5: memref<1x128xf32, #tpu.memory_space<vmem>>, %arg6: memref<128x128xbf16, #tpu.memory_space<vmem>>, %arg7: memref<1x128xf32, #tpu.memory_space<vmem>>, %arg8: memref<128x128xbf16, #tpu.memory_space<vmem>>, %arg9: memref<1x128xf32, #tpu.memory_space<vmem>>, %arg10: memref<128x16xbf16, #tpu.memory_space<vmem>>, %arg11: memref<1x16xf32, #tpu.memory_space<vmem>>, %arg12: memref<8x16xf32, #tpu.memory_space<vmem>>) attributes {dimension_semantics = [#tpu.dimension_semantics<parallel>], iteration_bounds = array<i64: 1>, scalar_prefetch = 0 : i64, scratch_operands = 0 : i64, tpu.core_type = #tpu.core_type<tc>, window_params = [{transform_indices = @transform_0, window_bounds = array<i64: 8, 32>}, {pipeline_mode = #tpu.pipeline_mode<synchronous>, transform_indices = @transform_1, window_bounds = array<i64: 1, 32>}, {pipeline_mode = #tpu.pipeline_mode<synchronous>, transform_indices = @transform_2, window_bounds = array<i64: 1, 32>}, {pipeline_mode = #tpu.pipeline_mode<synchronous>, transform_indices = @transform_3, window_bounds = array<i64: 32, 128>}, {pipeline_mode = #tpu.pipeline_mode<synchronous>, transform_indices = @transform_4, window_bounds = array<i64: 1, 128>}, {pipeline_mode = #tpu.pipeline_mode<synchronous>, transform_indices = @transform_5, window_bounds = array<i64: 128, 128>}, {pipeline_mode = #tpu.pipeline_mode<synchronous>, transform_indices = @transform_6, window_bounds = array<i64: 1, 128>}, {pipeline_mode = #tpu.pipeline_mode<synchronous>, transform_indices = @transform_7, window_bounds = array<i64: 128, 128>}, {pipeline_mode = #tpu.pipeline_mode<synchronous>, transform_indices = @transform_8, window_bounds = array<i64: 1, 128>}, {pipeline_mode = #tpu.pipeline_mode<synchronous>, transform_indices = @transform_9, window_bounds = array<i64: 128, 16>}, {pipeline_mode = #tpu.pipeline_mode<synchronous>, transform_indices = @transform_10, window_bounds = array<i64: 1, 16>}, {transform_indices = @transform_11, window_bounds = array<i64: 8, 16>}]} {
    %c0 = arith.constant 0 : index
    %c0_0 = arith.constant 0 : index
    %0 = vector.load %arg1[%c0, %c0_0] : memref<8x32xf32, #tpu.memory_space<vmem>>, vector<8x32xf32>
    %c0_1 = arith.constant 0 : index
    %c0_2 = arith.constant 0 : index
    %1 = vector.load %arg2[%c0_1, %c0_2] : memref<1x32xf32, #tpu.memory_space<vmem>>, vector<1x32xf32>
    %2 = vector.broadcast %1 : vector<1x32xf32> to vector<8x32xf32>
    %3 = arith.mulf %0, %2 : vector<8x32xf32>
    %c0_3 = arith.constant 0 : index
    %c0_4 = arith.constant 0 : index
    %4 = vector.load %arg3[%c0_3, %c0_4] : memref<1x32xf32, #tpu.memory_space<vmem>>, vector<1x32xf32>
    %5 = vector.broadcast %4 : vector<1x32xf32> to vector<8x32xf32>
    %6 = arith.addf %3, %5 : vector<8x32xf32>
    %cst = arith.constant 0.000000e+00 : f32
    %7 = vector.broadcast %cst : f32 to vector<8x32xf32>
    %8 = arith.maximumf %6, %7 : vector<8x32xf32>
    %9 = arith.truncf %8 : vector<8x32xf32> to vector<8x32xbf16>
    %c0_5 = arith.constant 0 : index
    %c0_6 = arith.constant 0 : index
    %10 = vector.load %arg4[%c0_5, %c0_6] : memref<32x128xbf16, #tpu.memory_space<vmem>>, vector<32x128xbf16>
    %cst_7 = arith.constant dense<0.000000e+00> : vector<8x128xf32>
    %11 = tpu.matmul %9, %10, %cst_7 {dimension_numbers = #tpu.dot_dimension_numbers<[1], [0], [0], [1], [0, 0, 1, 1], [], []>} : vector<8x32xbf16>, vector<32x128xbf16>, vector<8x128xf32> -> vector<8x128xf32>
    %c0_8 = arith.constant 0 : index
    %c0_9 = arith.constant 0 : index
    %12 = vector.load %arg5[%c0_8, %c0_9] : memref<1x128xf32, #tpu.memory_space<vmem>>, vector<1x128xf32>
    %13 = vector.broadcast %12 : vector<1x128xf32> to vector<8x128xf32>
    %14 = arith.addf %11, %13 : vector<8x128xf32>
    %cst_10 = arith.constant 0.000000e+00 : f32
    %15 = vector.broadcast %cst_10 : f32 to vector<8x128xf32>
    %16 = arith.maximumf %14, %15 : vector<8x128xf32>
    %17 = arith.truncf %16 : vector<8x128xf32> to vector<8x128xbf16>
    %c0_11 = arith.constant 0 : index
    %c0_12 = arith.constant 0 : index
    %18 = vector.load %arg6[%c0_11, %c0_12] : memref<128x128xbf16, #tpu.memory_space<vmem>>, vector<128x128xbf16>
    %cst_13 = arith.constant dense<0.000000e+00> : vector<8x128xf32>
    %19 = tpu.matmul %17, %18, %cst_13 {dimension_numbers = #tpu.dot_dimension_numbers<[1], [0], [0], [1], [0, 0, 1, 1], [], []>} : vector<8x128xbf16>, vector<128x128xbf16>, vector<8x128xf32> -> vector<8x128xf32>
    %c0_14 = arith.constant 0 : index
    %c0_15 = arith.constant 0 : index
    %20 = vector.load %arg7[%c0_14, %c0_15] : memref<1x128xf32, #tpu.memory_space<vmem>>, vector<1x128xf32>
    %21 = vector.broadcast %20 : vector<1x128xf32> to vector<8x128xf32>
    %22 = arith.addf %19, %21 : vector<8x128xf32>
    %cst_16 = arith.constant 0.000000e+00 : f32
    %23 = vector.broadcast %cst_16 : f32 to vector<8x128xf32>
    %24 = arith.maximumf %22, %23 : vector<8x128xf32>
    %25 = arith.truncf %24 : vector<8x128xf32> to vector<8x128xbf16>
    %c0_17 = arith.constant 0 : index
    %c0_18 = arith.constant 0 : index
    %26 = vector.load %arg8[%c0_17, %c0_18] : memref<128x128xbf16, #tpu.memory_space<vmem>>, vector<128x128xbf16>
    %cst_19 = arith.constant dense<0.000000e+00> : vector<8x128xf32>
    %27 = tpu.matmul %25, %26, %cst_19 {dimension_numbers = #tpu.dot_dimension_numbers<[1], [0], [0], [1], [0, 0, 1, 1], [], []>} : vector<8x128xbf16>, vector<128x128xbf16>, vector<8x128xf32> -> vector<8x128xf32>
    %c0_20 = arith.constant 0 : index
    %c0_21 = arith.constant 0 : index
    %28 = vector.load %arg9[%c0_20, %c0_21] : memref<1x128xf32, #tpu.memory_space<vmem>>, vector<1x128xf32>
    %29 = vector.broadcast %28 : vector<1x128xf32> to vector<8x128xf32>
    %30 = arith.addf %27, %29 : vector<8x128xf32>
    %cst_22 = arith.constant 0.000000e+00 : f32
    %31 = vector.broadcast %cst_22 : f32 to vector<8x128xf32>
    %32 = arith.maximumf %30, %31 : vector<8x128xf32>
    %33 = arith.truncf %32 : vector<8x128xf32> to vector<8x128xbf16>
    %c0_23 = arith.constant 0 : index
    %c0_24 = arith.constant 0 : index
    %34 = vector.load %arg10[%c0_23, %c0_24] : memref<128x16xbf16, #tpu.memory_space<vmem>>, vector<128x16xbf16>
    %cst_25 = arith.constant dense<0.000000e+00> : vector<8x16xf32>
    %35 = tpu.matmul %33, %34, %cst_25 {dimension_numbers = #tpu.dot_dimension_numbers<[1], [0], [0], [1], [0, 0, 1, 1], [], []>} : vector<8x128xbf16>, vector<128x16xbf16>, vector<8x16xf32> -> vector<8x16xf32>
    %c0_26 = arith.constant 0 : index
    %c0_27 = arith.constant 0 : index
    %36 = vector.load %arg11[%c0_26, %c0_27] : memref<1x16xf32, #tpu.memory_space<vmem>>, vector<1x16xf32>
    %37 = vector.broadcast %36 : vector<1x16xf32> to vector<8x16xf32>
    %38 = arith.addf %35, %37 : vector<8x16xf32>
    %c0_28 = arith.constant 0 : index
    %c0_29 = arith.constant 0 : index
    %39 = vector.load %arg12[%c0_28, %c0_29] : memref<8x16xf32, #tpu.memory_space<vmem>>, vector<8x16xf32>
    tpu.vector_store %arg12[%c0_28, %c0_29], %38 {strides = array<i32>} : memref<8x16xf32, #tpu.memory_space<vmem>>, vector<8x16xf32>,
    return
  }
  func.func @transform_0(%arg0: i32) -> (i32, i32) {
    %c0_i32 = arith.constant 0 : i32
    %c0_i32_0 = arith.constant 0 : i32
    return %arg0, %c0_i32 : i32, i32
  }
  func.func @transform_1(%arg0: i32) -> (i32, i32) {
    %c0_i32 = arith.constant 0 : i32
    %c0_i32_0 = arith.constant 0 : i32
    %c0_i32_1 = arith.constant 0 : i32
    return %c0_i32, %c0_i32_0 : i32, i32
  }
  func.func @transform_2(%arg0: i32) -> (i32, i32) {
    %c0_i32 = arith.constant 0 : i32
    %c0_i32_0 = arith.constant 0 : i32
    %c0_i32_1 = arith.constant 0 : i32
    return %c0_i32, %c0_i32_0 : i32, i32
  }
  func.func @transform_3(%arg0: i32) -> (i32, i32) {
    %c0_i32 = arith.constant 0 : i32
    %c0_i32_0 = arith.constant 0 : i32
    %c0_i32_1 = arith.constant 0 : i32
    return %c0_i32, %c0_i32_0 : i32, i32
  }
  func.func @transform_4(%arg0: i32) -> (i32, i32) {
    %c0_i32 = arith.constant 0 : i32
    %c0_i32_0 = arith.constant 0 : i32
    %c0_i32_1 = arith.constant 0 : i32
    return %c0_i32, %c0_i32_0 : i32, i32
  }
  func.func @transform_5(%arg0: i32) -> (i32, i32) {
    %c0_i32 = arith.constant 0 : i32
    %c0_i32_0 = arith.constant 0 : i32
    %c0_i32_1 = arith.constant 0 : i32
    return %c0_i32, %c0_i32_0 : i32, i32
  }
  func.func @transform_6(%arg0: i32) -> (i32, i32) {
    %c0_i32 = arith.constant 0 : i32
    %c0_i32_0 = arith.constant 0 : i32
    %c0_i32_1 = arith.constant 0 : i32
    return %c0_i32, %c0_i32_0 : i32, i32
  }
  func.func @transform_7(%arg0: i32) -> (i32, i32) {
    %c0_i32 = arith.constant 0 : i32
    %c0_i32_0 = arith.constant 0 : i32
    %c0_i32_1 = arith.constant 0 : i32
    return %c0_i32, %c0_i32_0 : i32, i32
  }
  func.func @transform_8(%arg0: i32) -> (i32, i32) {
    %c0_i32 = arith.constant 0 : i32
    %c0_i32_0 = arith.constant 0 : i32
    %c0_i32_1 = arith.constant 0 : i32
    return %c0_i32, %c0_i32_0 : i32, i32
  }
  func.func @transform_9(%arg0: i32) -> (i32, i32) {
    %c0_i32 = arith.constant 0 : i32
    %c0_i32_0 = arith.constant 0 : i32
    %c0_i32_1 = arith.constant 0 : i32
    return %c0_i32, %c0_i32_0 : i32, i32
  }
  func.func @transform_10(%arg0: i32) -> (i32, i32) {
    %c0_i32 = arith.constant 0 : i32
    %c0_i32_0 = arith.constant 0 : i32
    %c0_i32_1 = arith.constant 0 : i32
    return %c0_i32, %c0_i32_0 : i32, i32
  }
  func.func @transform_11(%arg0: i32) -> (i32, i32) {
    %c0_i32 = arith.constant 0 : i32
    %c0_i32_0 = arith.constant 0 : i32
    return %arg0, %c0_i32 : i32, i32
  }
}

</mosaic_0001>

<llo_original>
// kernel: block_forward.1
$region0: #{block_forward.1}
  #allocation0 [shape = 'u32[]', space=smem, size = 0x4, offset = 0x4, fixed_abs, tag = 'smem constant byte address 0x4 - core index']
  #allocation1 [shape = 'u32[144,128]{1,0:T(1,128)}', space=vmem, size = 0x12000, scoped, tag = 'internal scratch']
  %s0 = inlined_call_operand.hbm [shape: f32[8,32], index: 0, kind: input, shape index: {}]
  %s1 = inlined_call_operand.hbm [shape: f32[1,32], index: 1, kind: input, shape index: {}]
  %s2 = inlined_call_operand.hbm [shape: f32[1,32], index: 2, kind: input, shape index: {}]
  %s3 = inlined_call_operand.vmem [shape: bf16[32,128], index: 3, kind: input, shape index: {}]
  %s4 = inlined_call_operand.hbm [shape: f32[1,128], index: 4, kind: input, shape index: {}]
  %s5 = inlined_call_operand.vmem [shape: bf16[128,128], index: 5, kind: input, shape index: {}]
  %s6 = inlined_call_operand.hbm [shape: f32[1,128], index: 6, kind: input, shape index: {}]
  %s7 = inlined_call_operand.hbm [shape: bf16[128,128], index: 7, kind: input, shape index: {}]
  %s8 = inlined_call_operand.hbm [shape: f32[1,128], index: 8, kind: input, shape index: {}]
  %s9 = inlined_call_operand.vmem [shape: bf16[128,16], index: 9, kind: input, shape index: {}]
  %s10 = inlined_call_operand.hbm [shape: f32[1,16], index: 10, kind: input, shape index: {}]
  %s11 = inlined_call_operand.hbm [shape: f32[8,16], index: 11, kind: output, shape index: {}]
  %s12 = sld [smem:[#allocation0]]
  $region86: #{block_forward.1} parent=0
    _
  %s14 = ssub.s32 1, %s12
  %s15 = scalar_select 0, %s14, %s12
  $region1: #{block_forward.1} parent=0
    #allocation2 [shape = 'u8[4096]{0}', space=vmem, size = 0x1000, scoped, tag = 'input window, operand 0, single buffered']
    #allocation3 [shape = 's32[1]{0}', space=sflag, size = 0x4, scoped, tag = 'scoped memory for block_forward.1']
    #allocation4 [shape = 's32[1]{0}', space=sflag, size = 0x4, scoped, tag = 'scoped memory for block_forward.1']
    #allocation5 [shape = 'u8[512]{0}', space=vmem, size = 0x400, scoped, tag = 'input window, operand 1, single buffered']
    #allocation6 [shape = 's32[1]{0}', space=sflag, size = 0x4, scoped, tag = 'scoped memory for block_forward.1']
    #allocation7 [shape = 'u8[512]{0}', space=vmem, size = 0x400, scoped, tag = 'input window, operand 2, single buffered']
    #allocation8 [shape = 'u8[512]{0}', space=vmem, size = 0x400, scoped, tag = 'input window, operand 4, single buffered']
    #allocation9 [shape = 's32[1]{0}', space=sflag, size = 0x4, scoped, tag = 'scoped memory for block_forward.1']
    #allocation10 [shape = 'u8[512]{0}', space=vmem, size = 0x400, scoped, tag = 'input window, operand 6, single buffered']
    #allocation11 [shape = 'u8[32768]{0}', space=vmem, size = 0x8000, scoped, tag = 'input window, operand 7, single buffered']
    #allocation12 [shape = 's32[1]{0}', space=sflag, size = 0x4, scoped, tag = 'scoped memory for block_forward.1']
    #allocation13 [shape = 'u8[512]{0}', space=vmem, size = 0x400, scoped, tag = 'input window, operand 8, single buffered']
    #allocation14 [shape = 'u8[512]{0}', space=vmem, size = 0x400, scoped, tag = 'input window, operand 10, single buffered']
    #allocation15 [shape = 's32[1]{0}', space=sflag, size = 0x4, scoped, tag = 'scoped memory for block_forward.1']
    #allocation16 [shape = 'u8[4096]{0}', space=vmem, size = 0x1000, scoped, tag = 'output window, operand 0, single buffered']
    %16 = vsyncpa [#allocation3], 0
    %17 = vsyncpa [#allocation6], 0
    %18 = vsyncpa [#allocation9], 0
    %19 = vsyncpa [#allocation12], 0
    %20 = vsyncpa [#allocation15], 0
    %21 = vsyncpa [#allocation4], 0
    // Predicated region
    $region2: #{block_forward.1} parent=1 // pred_check
      _
    $region3: #{block_forward.1} parent=1 // pred_check_branch
      %23 = sbr.rel (0) target = $region5
    $region4: #{block_forward.1} parent=1 // pred_region
      %s25 = ssub.s32 128, 128
      %26 = vsyncadd [#allocation3], %s25
      %s28 = sshll.u32 [#allocation2], 4
      %s29 = int_to_ptr.vmem [resolvable:$true] %s28
      %31 = dma.hbm_to_vmem [thread:$0]  %s0, 128, %s29, [#allocation3]
    $region5: #{block_forward.1} parent=1 // pred_fallthru
      _
    // Predicated region
    $region6: #{block_forward.1} parent=1 // pred_check
      _
    $region7: #{block_forward.1} parent=1 // pred_check_branch
      %33 = sbr.rel (0) target = $region9
    $region8: #{block_forward.1} parent=1 // pred_region
      %s35 = ssub.s32 16, 16
      %36 = vsyncadd [#allocation6], %s35
      %s38 = sshll.u32 [#allocation5], 4
      %s39 = int_to_ptr.vmem [resolvable:$true] %s38
      %41 = dma.hbm_to_vmem [thread:$0]  %s1, 16, %s39, [#allocation6]
    $region9: #{block_forward.1} parent=1 // pred_fallthru
      _
    // Predicated region
    $region10: #{block_forward.1} parent=1 // pred_check
      _
    $region11: #{block_forward.1} parent=1 // pred_check_branch
      %43 = sbr.rel (0) target = $region13
    $region12: #{block_forward.1} parent=1 // pred_region
      %s45 = ssub.s32 16, 16
      %46 = vsyncadd [#allocation6], %s45
      %s48 = sshll.u32 [#allocation7], 4
      %s49 = int_to_ptr.vmem [resolvable:$true] %s48
      %51 = dma.hbm_to_vmem [thread:$0]  %s2, 16, %s49, [#allocation6]
    $region13: #{block_forward.1} parent=1 // pred_fallthru
      _
    // Predicated region
    $region14: #{block_forward.1} parent=1 // pred_check
      _
    $region15: #{block_forward.1} parent=1 // pred_check_branch
      %53 = sbr.rel (0) target = $region17
    $region16: #{block_forward.1} parent=1 // pred_region
      _
    $region17: #{block_forward.1} parent=1 // pred_fallthru
      _
    // Predicated region
    $region18: #{block_forward.1} parent=1 // pred_check
      _
    $region19: #{block_forward.1} parent=1 // pred_check_branch
      %55 = sbr.rel (0) target = $region21
    $region20: #{block_forward.1} parent=1 // pred_region
      %s57 = ssub.s32 16, 16
      %58 = vsyncadd [#allocation9], %s57
      %s60 = sshll.u32 [#allocation8], 4
      %s61 = int_to_ptr.vmem [resolvable:$true] %s60
      %63 = dma.hbm_to_vmem [thread:$0]  %s4, 16, %s61, [#allocation9]
    $region21: #{block_forward.1} parent=1 // pred_fallthru
      _
    // Predicated region
    $region22: #{block_forward.1} parent=1 // pred_check
      _
    $region23: #{block_forward.1} parent=1 // pred_check_branch
      %65 = sbr.rel (0) target = $region25
    $region24: #{block_forward.1} parent=1 // pred_region
      _
    $region25: #{block_forward.1} parent=1 // pred_fallthru
      _
    // Predicated region
    $region26: #{block_forward.1} parent=1 // pred_check
      _
    $region27: #{block_forward.1} parent=1 // pred_check_branch
      %67 = sbr.rel (0) target = $region29
    $region28: #{block_forward.1} parent=1 // pred_region
      %s69 = ssub.s32 16, 16
      %70 = vsyncadd [#allocation9], %s69
      %s72 = sshll.u32 [#allocation10], 4
      %s73 = int_to_ptr.vmem [resolvable:$true] %s72
      %75 = dma.hbm_to_vmem [thread:$0]  %s6, 16, %s73, [#allocation9]
    $region29: #{block_forward.1} parent=1 // pred_fallthru
      _
    // Predicated region
    $region30: #{block_forward.1} parent=1 // pred_check
      _
    $region31: #{block_forward.1} parent=1 // pred_check_branch
      %77 = sbr.rel (0) target = $region33
    $region32: #{block_forward.1} parent=1 // pred_region
      %s79 = ssub.s32 1024, 1024
      %80 = vsyncadd [#allocation12], %s79
      %s81 = sshll.u32 [#allocation11], 4
      %s82 = int_to_ptr.vmem [resolvable:$true] %s81
      %87 = dma.hbm_to_vmem [thread:$0]  %s7, 1024, %s82, [#allocation12], 64, 64, 4
    $region33: #{block_forward.1} parent=1 // pred_fallthru
      _
    // Predicated region
    $region34: #{block_forward.1} parent=1 // pred_check
      _
    $region35: #{block_forward.1} parent=1 // pred_check_branch
      %89 = sbr.rel (0) target = $region37
    $region36: #{block_forward.1} parent=1 // pred_region
      %s91 = ssub.s32 16, 16
      %92 = vsyncadd [#allocation12], %s91
      %s94 = sshll.u32 [#allocation13], 4
      %s95 = int_to_ptr.vmem [resolvable:$true] %s94
      %97 = dma.hbm_to_vmem [thread:$0]  %s8, 16, %s95, [#allocation12]
    $region37: #{block_forward.1} parent=1 // pred_fallthru
      _
    // Predicated region
    $region38: #{block_forward.1} parent=1 // pred_check
      _
    $region39: #{block_forward.1} parent=1 // pred_check_branch
      %99 = sbr.rel (0) target = $region41
    $region40: #{block_forward.1} parent=1 // pred_region
      _
    $region41: #{block_forward.1} parent=1 // pred_fallthru
      _
    // Predicated region
    $region42: #{block_forward.1} parent=1 // pred_check
      _
    $region43: #{block_forward.1} parent=1 // pred_check_branch
      %101 = sbr.rel (0) target = $region45
    $region44: #{block_forward.1} parent=1 // pred_region
      %s103 = ssub.s32 16, 16
      %104 = vsyncadd [#allocation15], %s103
      %s106 = sshll.u32 [#allocation14], 4
      %s107 = int_to_ptr.vmem [resolvable:$true] %s106
      %109 = dma.hbm_to_vmem [thread:$0]  %s10, 16, %s107, [#allocation15]
    $region45: #{block_forward.1} parent=1 // pred_fallthru
      _
    // Predicated region
    $region46: #{block_forward.1} parent=1 // pred_check
      _
    $region47: #{block_forward.1} parent=1 // pred_check_branch
      %111 = sbr.rel (0) target = $region49
    $region48: #{block_forward.1} parent=1 // pred_region
      %112 = dma.done [#allocation3], 128
    $region49: #{block_forward.1} parent=1 // pred_fallthru
      _
    // Predicated region
    $region50: #{block_forward.1} parent=1 // pred_check
      _
    $region51: #{block_forward.1} parent=1 // pred_check_branch
      %114 = sbr.rel (0) target = $region53
    $region52: #{block_forward.1} parent=1 // pred_region
      %115 = dma.done [#allocation6], 16
    $region53: #{block_forward.1} parent=1 // pred_fallthru
      _
    // Predicated region
    $region54: #{block_forward.1} parent=1 // pred_check
      _
    $region55: #{block_forward.1} parent=1 // pred_check_branch
      %117 = sbr.rel (0) target = $region57
    $region56: #{block_forward.1} parent=1 // pred_region
      %118 = dma.done [#allocation6], 16
    $region57: #{block_forward.1} parent=1 // pred_fallthru
      _
    // Predicated region
    $region58: #{block_forward.1} parent=1 // pred_check
      _
    $region59: #{block_forward.1} parent=1 // pred_check_branch
      %120 = sbr.rel (0) target = $region61
    $region60: #{block_forward.1} parent=1 // pred_region
      %121 = dma.done [#allocation9], 16
    $region61: #{block_forward.1} parent=1 // pred_fallthru
      _
    // Predicated region
    $region62: #{block_forward.1} parent=1 // pred_check
      _
    $region63: #{block_forward.1} parent=1 // pred_check_branch
      %123 = sbr.rel (0) target = $region65
    $region64: #{block_forward.1} parent=1 // pred_region
      %124 = dma.done [#allocation9], 16
    $region65: #{block_forward.1} parent=1 // pred_fallthru
      _
    // Predicated region
    $region66: #{block_forward.1} parent=1 // pred_check
      _
    $region67: #{block_forward.1} parent=1 // pred_check_branch
      %126 = sbr.rel (0) target = $region69
    $region68: #{block_forward.1} parent=1 // pred_region
      %127 = dma.done [#allocation12], 1024
    $region69: #{block_forward.1} parent=1 // pred_fallthru
      _
    // Predicated region
    $region70: #{block_forward.1} parent=1 // pred_check
      _
    $region71: #{block_forward.1} parent=1 // pred_check_branch
      %129 = sbr.rel (0) target = $region73
    $region72: #{block_forward.1} parent=1 // pred_region
      %130 = dma.done [#allocation12], 16
    $region73: #{block_forward.1} parent=1 // pred_fallthru
      _
    // Predicated region
    $region74: #{block_forward.1} parent=1 // pred_check
      _
    $region75: #{block_forward.1} parent=1 // pred_check_branch
      %132 = sbr.rel (0) target = $region77
    $region76: #{block_forward.1} parent=1 // pred_region
      %133 = dma.done [#allocation15], 16
    $region77: #{block_forward.1} parent=1 // pred_fallthru
      _
    %v135 = vld [vmem:[#allocation2] sm:$0xff]
    %v136 = vld [vmem:[#allocation5] sm:$0x1]
    %v138 = vlaneseq
    %v139 = vshrl.u32 %v138, 7
    %v140 = vsub.s32 0, %v139
    %v141 = vrot.slane %v136, %v140
    %v143 = vmul.f32 %v135, %v141
    %v144 = vld [vmem:[#allocation7] sm:$0x1]
    %v146 = vlaneseq
    %v147 = vshrl.u32 %v146, 7
    %v148 = vsub.s32 0, %v147
    %v149 = vrot.slane %v144, %v148
    %v151 = vadd.f32 %v143, %v149
    %v152 = vmax.f32 %v151, 0.0
    %v153 = vpack.c.bf16 %v152, %v152
    %v154 = vld [vmem:[%s3] sm:$0xf]
    %v155 = vld [vmem:[%s3 + $0x4] sm:$0xf]
    %v156 = vld [vmem:[%s3 + $0x8] sm:$0xf]
    %v157 = vld [vmem:[%s3 + $0xc] sm:$0xf]
    %v158 = vld [vmem:[#allocation8] sm:$0x1]
    %v160 = vlaneseq
    %v161 = vshrl.u32 %v160, 7
    %v162 = vsub.s32 0, %v161
    %v163 = vrot.slane %v158, %v162
    %v169 = vunpack.c.l.b16 %v154
    %v170 = vunpack.c.l.b16 %v155
    %v171 = vunpack.c.l.b16 %v156
    %v172 = vunpack.c.l.b16 %v157
    %v173 = vpack.c.b16 %v170, %v169
    %v174 = vpack.c.b16 %v172, %v171
    %vm177 = vcmask 261120
    %v179 = vsel %vm177, %v153, 0
    %181 = vmatprep.subr.bf16.mxu0 0
    %182 = vmatpush1.bf16.msra.mxu0 0
    %183 = vmatprep.subr.bf16.mxu0 0
    %184 = vmatpush1.bf16.msra.mxu0 0
    %185 = vmatprep.subr.bf16.mxu0 0
    %186 = vmatpush1.bf16.msra.mxu0 0
    %187 = vmatprep.subr.bf16.mxu0 0
    %188 = vmatpush1.bf16.msra.mxu0 0
    %189 = vmatprep.subr.bf16.mxu0 0
    %190 = vmatpush1.bf16.msra.mxu0 0
    %191 = vmatprep.subr.bf16.mxu0 0
    %192 = vmatpush1.bf16.msra.mxu0 0
    %193 = vmatprep.subr.bf16.mxu0 0
    %194 = vmatpush1.bf16.msra.mxu0 %v174
    %195 = vmatprep.subr.bf16.mxu0 0
    %196 = vmatpush1.bf16.msra.mxu0 %v173
    %197 = vmatprep.subr.bf16.mxu0 0
    %198 = vmatpush2.bf16.msra.mxu0 0
    %199 = vmatprep.subr.bf16.mxu0 0
    %200 = vmatpush2.bf16.msra.mxu0 0
    %201 = vmatprep.subr.bf16.mxu0 0
    %202 = vmatpush2.bf16.msra.mxu0 0
    %203 = vmatprep.subr.bf16.mxu0 0
    %204 = vmatpush2.bf16.msra.mxu0 0
    %205 = vmatprep.subr.bf16.mxu0 0
    %206 = vmatpush2.bf16.msra.mxu0 0
    %207 = vmatprep.subr.bf16.mxu0 0
    %208 = vmatpush2.bf16.msra.mxu0 0
    %209 = vmatprep.subr.bf16.mxu0 0
    %210 = vmatpush2.bf16.msra.mxu0 0
    %211 = vmatprep.subr.bf16.mxu0 0
    %212 = vmatpush2.bf16.msra.mxu0 0
    %213 = vmatprep.mubr.bf16.mxu0 0
    %214 = vmatmul.mubr.bf16.gmra.mxu0 %v179
    %v215 = vpop.f32.mrf.mxu0
    %v216 = vadd.f32 %v163, %v215
    %v217 = vpop.f32.mrf.mxu0
    %v218 = vpop.f32.mrf.mxu0
    %v219 = vpop.f32.mrf.mxu0
    %220 = vdwg.mxu0
    %v221 = vmax.f32 %v216, 0.0
    %v222 = vpack.c.bf16 %v221, %v221
    %v223 = vld [vmem:[%s5] sm:$0xf]
    %v224 = vld [vmem:[%s5 + $0x4] sm:$0xf]
    %v225 = vld [vmem:[%s5 + $0x8] sm:$0xf]
    %v226 = vld [vmem:[%s5 + $0xc] sm:$0xf]
    %v227 = vld [vmem:[%s5 + $0x10] sm:$0xf]
    %v228 = vld [vmem:[%s5 + $0x14] sm:$0xf]
    %v229 = vld [vmem:[%s5 + $0x18] sm:$0xf]
    %v230 = vld [vmem:[%s5 + $0x1c] sm:$0xf]
    %v231 = vld [vmem:[%s5 + $0x20] sm:$0xf]
    %v232 = vld [vmem:[%s5 + $0x24] sm:$0xf]
    %v233 = vld [vmem:[%s5 + $0x28] sm:$0xf]
    %v234 = vld [vmem:[%s5 + $0x2c] sm:$0xf]
    %v235 = vld [vmem:[%s5 + $0x30] sm:$0xf]
    %v236 = vld [vmem:[%s5 + $0x34] sm:$0xf]
    %v237 = vld [vmem:[%s5 + $0x38] sm:$0xf]
    %v238 = vld [vmem:[%s5 + $0x3c] sm:$0xf]
    %v239 = vld [vmem:[#allocation10] sm:$0x1]
    %v241 = vlaneseq
    %v242 = vshrl.u32 %v241, 7
    %v243 = vsub.s32 0, %v242
    %v244 = vrot.slane %v239, %v243
    %v262 = vunpack.c.l.b16 %v223
    %v263 = vunpack.c.l.b16 %v224
    %v264 = vunpack.c.l.b16 %v225
    %v265 = vunpack.c.l.b16 %v226
    %v266 = vunpack.c.l.b16 %v227
    %v267 = vunpack.c.l.b16 %v228
    %v268 = vunpack.c.l.b16 %v229
    %v269 = vunpack.c.l.b16 %v230
    %v270 = vunpack.c.l.b16 %v231
    %v271 = vunpack.c.l.b16 %v232
    %v272 = vunpack.c.l.b16 %v233
    %v273 = vunpack.c.l.b16 %v234
    %v274 = vunpack.c.l.b16 %v235
    %v275 = vunpack.c.l.b16 %v236
    %v276 = vunpack.c.l.b16 %v237
    %v277 = vunpack.c.l.b16 %v238
    %v278 = vpack.c.b16 %v263, %v262
    %v279 = vpack.c.b16 %v265, %v264
    %v280 = vpack.c.b16 %v267, %v266
    %v281 = vpack.c.b16 %v269, %v268
    %v282 = vpack.c.b16 %v271, %v270
    %v283 = vpack.c.b16 %v273, %v272
    %v284 = vpack.c.b16 %v275, %v274
    %v285 = vpack.c.b16 %v277, %v276
    %294 = vmatprep.subr.bf16.mxu0 0
    %295 = vmatpush1.bf16.msra.mxu0 %v285
    %296 = vmatprep.subr.bf16.mxu0 0
    %297 = vmatpush1.bf16.msra.mxu0 %v284
    %298 = vmatprep.subr.bf16.mxu0 0
    %299 = vmatpush1.bf16.msra.mxu0 %v283
    %300 = vmatprep.subr.bf16.mxu0 0
    %301 = vmatpush1.bf16.msra.mxu0 %v282
    %302 = vmatprep.subr.bf16.mxu0 0
    %303 = vmatpush1.bf16.msra.mxu0 %v281
    %304 = vmatprep.subr.bf16.mxu0 0
    %305 = vmatpush1.bf16.msra.mxu0 %v280
    %306 = vmatprep.subr.bf16.mxu0 0
    %307 = vmatpush1.bf16.msra.mxu0 %v279
    %308 = vmatprep.subr.bf16.mxu0 0
    %309 = vmatpush1.bf16.msra.mxu0 %v278
    %310 = vmatprep.subr.bf16.mxu0 0
    %311 = vmatpush2.bf16.msra.mxu0 0
    %312 = vmatprep.subr.bf16.mxu0 0
    %313 = vmatpush2.bf16.msra.mxu0 0
    %314 = vmatprep.subr.bf16.mxu0 0
    %315 = vmatpush2.bf16.msra.mxu0 0
    %316 = vmatprep.subr.bf16.mxu0 0
    %317 = vmatpush2.bf16.msra.mxu0 0
    %318 = vmatprep.subr.bf16.mxu0 0
    %319 = vmatpush2.bf16.msra.mxu0 0
    %320 = vmatprep.subr.bf16.mxu0 0
    %321 = vmatpush2.bf16.msra.mxu0 0
    %322 = vmatprep.subr.bf16.mxu0 0
    %323 = vmatpush2.bf16.msra.mxu0 0
    %324 = vmatprep.subr.bf16.mxu0 0
    %325 = vmatpush2.bf16.msra.mxu0 0
    %326 = vmatprep.mubr.bf16.mxu0 0
    %327 = vmatmul.mubr.bf16.gmra.mxu0 %v222
    %v328 = vpop.f32.mrf.mxu0
    %v329 = vadd.f32 %v244, %v328
    %v330 = vpop.f32.mrf.mxu0
    %v331 = vpop.f32.mrf.mxu0
    %v332 = vpop.f32.mrf.mxu0
    %333 = vdwg.mxu0
    %v334 = vmax.f32 %v329, 0.0
    %v335 = vpack.c.bf16 %v334, %v334
    %v336 = vld [vmem:[#allocation11] sm:$0xf]
    %v337 = vld [vmem:[#allocation11 + $0x4] sm:$0xf]
    %v338 = vld [vmem:[#allocation11 + $0x8] sm:$0xf]
    %v339 = vld [vmem:[#allocation11 + $0xc] sm:$0xf]
    %v340 = vld [vmem:[#allocation11 + $0x10] sm:$0xf]
    %v341 = vld [vmem:[#allocation11 + $0x14] sm:$0xf]
    %v342 = vld [vmem:[#allocation11 + $0x18] sm:$0xf]
    %v343 = vld [vmem:[#allocation11 + $0x1c] sm:$0xf]
    %v344 = vld [vmem:[#allocation11 + $0x20] sm:$0xf]
    %v345 = vld [vmem:[#allocation11 + $0x24] sm:$0xf]
    %v346 = vld [vmem:[#allocation11 + $0x28] sm:$0xf]
    %v347 = vld [vmem:[#allocation11 + $0x2c] sm:$0xf]
    %v348 = vld [vmem:[#allocation11 + $0x30] sm:$0xf]
    %v349 = vld [vmem:[#allocation11 + $0x34] sm:$0xf]
    %v350 = vld [vmem:[#allocation11 + $0x38] sm:$0xf]
    %v351 = vld [vmem:[#allocation11 + $0x3c] sm:$0xf]
    %v352 = vld [vmem:[#allocation13] sm:$0x1]
    %v354 = vlaneseq
    %v355 = vshrl.u32 %v354, 7
    %v356 = vsub.s32 0, %v355
    %v357 = vrot.slane %v352, %v356
    %v375 = vunpack.c.l.b16 %v336
    %v376 = vunpack.c.l.b16 %v337
    %v377 = vunpack.c.l.b16 %v338
    %v378 = vunpack.c.l.b16 %v339
    %v379 = vunpack.c.l.b16 %v340
    %v380 = vunpack.c.l.b16 %v341
    %v381 = vunpack.c.l.b16 %v342
    %v382 = vunpack.c.l.b16 %v343
    %v383 = vunpack.c.l.b16 %v344
    %v384 = vunpack.c.l.b16 %v345
    %v385 = vunpack.c.l.b16 %v346
    %v386 = vunpack.c.l.b16 %v347
    %v387 = vunpack.c.l.b16 %v348
    %v388 = vunpack.c.l.b16 %v349
    %v389 = vunpack.c.l.b16 %v350
    %v390 = vunpack.c.l.b16 %v351
    %v391 = vpack.c.b16 %v376, %v375
    %v392 = vpack.c.b16 %v378, %v377
    %v393 = vpack.c.b16 %v380, %v379
    %v394 = vpack.c.b16 %v382, %v381
    %v395 = vpack.c.b16 %v384, %v383
    %v396 = vpack.c.b16 %v386, %v385
    %v397 = vpack.c.b16 %v388, %v387
    %v398 = vpack.c.b16 %v390, %v389
    %407 = vmatprep.subr.bf16.mxu0 0
    %408 = vmatpush1.bf16.msra.mxu0 %v398
    %409 = vmatprep.subr.bf16.mxu0 0
    %410 = vmatpush1.bf16.msra.mxu0 %v397
    %411 = vmatprep.subr.bf16.mxu0 0
    %412 = vmatpush1.bf16.msra.mxu0 %v396
    %413 = vmatprep.subr.bf16.mxu0 0
    %414 = vmatpush1.bf16.msra.mxu0 %v395
    %415 = vmatprep.subr.bf16.mxu0 0
    %416 = vmatpush1.bf16.msra.mxu0 %v394
    %417 = vmatprep.subr.bf16.mxu0 0
    %418 = vmatpush1.bf16.msra.mxu0 %v393
    %419 = vmatprep.subr.bf16.mxu0 0
    %420 = vmatpush1.bf16.msra.mxu0 %v392
    %421 = vmatprep.subr.bf16.mxu0 0
    %422 = vmatpush1.bf16.msra.mxu0 %v391
    %423 = vmatprep.subr.bf16.mxu0 0
    %424 = vmatpush2.bf16.msra.mxu0 0
    %425 = vmatprep.subr.bf16.mxu0 0
    %426 = vmatpush2.bf16.msra.mxu0 0
    %427 = vmatprep.subr.bf16.mxu0 0
    %428 = vmatpush2.bf16.msra.mxu0 0
    %429 = vmatprep.subr.bf16.mxu0 0
    %430 = vmatpush2.bf16.msra.mxu0 0
    %431 = vmatprep.subr.bf16.mxu0 0
    %432 = vmatpush2.bf16.msra.mxu0 0
    %433 = vmatprep.subr.bf16.mxu0 0
    %434 = vmatpush2.bf16.msra.mxu0 0
    %435 = vmatprep.subr.bf16.mxu0 0
    %436 = vmatpush2.bf16.msra.mxu0 0
    %437 = vmatprep.subr.bf16.mxu0 0
    %438 = vmatpush2.bf16.msra.mxu0 0
    %439 = vmatprep.mubr.bf16.mxu0 0
    %440 = vmatmul.mubr.bf16.gmra.mxu0 %v335
    %v441 = vpop.f32.mrf.mxu0
    %v442 = vadd.f32 %v357, %v441
    %v443 = vpop.f32.mrf.mxu0
    %v444 = vpop.f32.mrf.mxu0
    %v445 = vpop.f32.mrf.mxu0
    %446 = vdwg.mxu0
    %v447 = vmax.f32 %v442, 0.0
    %v448 = vpack.c.bf16 %v447, %v447
    %v449 = vld [vmem:[%s9] sm:$0xf]
    %v450 = vld [vmem:[%s9 + $0x4] sm:$0xf]
    %v451 = vld [vmem:[%s9 + $0x8] sm:$0xf]
    %v452 = vld [vmem:[%s9 + $0xc] sm:$0xf]
    %v453 = vld [vmem:[%s9 + $0x10] sm:$0xf]
    %v454 = vld [vmem:[%s9 + $0x14] sm:$0xf]
    %v455 = vld [vmem:[%s9 + $0x18] sm:$0xf]
    %v456 = vld [vmem:[%s9 + $0x1c] sm:$0xf]
    %v457 = vld [vmem:[%s9 + $0x20] sm:$0xf]
    %v458 = vld [vmem:[%s9 + $0x24] sm:$0xf]
    %v459 = vld [vmem:[%s9 + $0x28] sm:$0xf]
    %v460 = vld [vmem:[%s9 + $0x2c] sm:$0xf]
    %v461 = vld [vmem:[%s9 + $0x30] sm:$0xf]
    %v462 = vld [vmem:[%s9 + $0x34] sm:$0xf]
    %v463 = vld [vmem:[%s9 + $0x38] sm:$0xf]
    %v464 = vld [vmem:[%s9 + $0x3c] sm:$0xf]
    %v465 = vld [vmem:[#allocation14] sm:$0x1]
    %v467 = vlaneseq
    %v468 = vshrl.u32 %v467, 7
    %v469 = vsub.s32 0, %v468
    %v470 = vrot.slane %v465, %v469
    %v488 = vunpack.c.l.b16 %v449
    %v489 = vunpack.c.l.b16 %v450
    %v490 = vunpack.c.l.b16 %v451
    %v491 = vunpack.c.l.b16 %v452
    %v492 = vunpack.c.l.b16 %v453
    %v493 = vunpack.c.l.b16 %v454
    %v494 = vunpack.c.l.b16 %v455
    %v495 = vunpack.c.l.b16 %v456
    %v496 = vunpack.c.l.b16 %v457
    %v497 = vunpack.c.l.b16 %v458
    %v498 = vunpack.c.l.b16 %v459
    %v499 = vunpack.c.l.b16 %v460
    %v500 = vunpack.c.l.b16 %v461
    %v501 = vunpack.c.l.b16 %v462
    %v502 = vunpack.c.l.b16 %v463
    %v503 = vunpack.c.l.b16 %v464
    %v504 = vpack.c.b16 %v489, %v488
    %v505 = vpack.c.b16 %v491, %v490
    %v506 = vpack.c.b16 %v493, %v492
    %v507 = vpack.c.b16 %v495, %v494
    %v508 = vpack.c.b16 %v497, %v496
    %v509 = vpack.c.b16 %v499, %v498
    %v510 = vpack.c.b16 %v501, %v500
    %v511 = vpack.c.b16 %v503, %v502
    %520 = vmatprep.subr.bf16.mxu0 0
    %521 = vmatpush1.bf16.msra.mxu0 %v511
    %522 = vmatprep.subr.bf16.mxu0 0
    %523 = vmatpush1.bf16.msra.mxu0 %v510
    %524 = vmatprep.subr.bf16.mxu0 0
    %525 = vmatpush1.bf16.msra.mxu0 %v509
    %526 = vmatprep.subr.bf16.mxu0 0
    %527 = vmatpush1.bf16.msra.mxu0 %v508
    %528 = vmatprep.subr.bf16.mxu0 0
    %529 = vmatpush1.bf16.msra.mxu0 %v507
    %530 = vmatprep.subr.bf16.mxu0 0
    %531 = vmatpush1.bf16.msra.mxu0 %v506
    %532 = vmatprep.subr.bf16.mxu0 0
    %533 = vmatpush1.bf16.msra.mxu0 %v505
    %534 = vmatprep.subr.bf16.mxu0 0
    %535 = vmatpush1.bf16.msra.mxu0 %v504
    %536 = vmatprep.subr.bf16.mxu0 0
    %537 = vmatpush2.bf16.msra.mxu0 0
    %538 = vmatprep.subr.bf16.mxu0 0
    %539 = vmatpush2.bf16.msra.mxu0 0
    %540 = vmatprep.subr.bf16.mxu0 0
    %541 = vmatpush2.bf16.msra.mxu0 0
    %542 = vmatprep.subr.bf16.mxu0 0
    %543 = vmatpush2.bf16.msra.mxu0 0
    %544 = vmatprep.subr.bf16.mxu0 0
    %545 = vmatpush2.bf16.msra.mxu0 0
    %546 = vmatprep.subr.bf16.mxu0 0
    %547 = vmatpush2.bf16.msra.mxu0 0
    %548 = vmatprep.subr.bf16.mxu0 0
    %549 = vmatpush2.bf16.msra.mxu0 0
    %550 = vmatprep.subr.bf16.mxu0 0
    %551 = vmatpush2.bf16.msra.mxu0 0
    %552 = vmatprep.mubr.bf16.mxu0 0
    %553 = vmatmul.mubr.bf16.gmra.mxu0 %v448
    %v554 = vpop.f32.mrf.mxu0
    %v555 = vadd.f32 %v470, %v554
    %v556 = vpop.f32.mrf.mxu0
    %v557 = vpop.f32.mrf.mxu0
    %v558 = vpop.f32.mrf.mxu0
    %559 = vdwg.mxu0
    %vm560 = vcmask 130048
    %561 = vst.msk [vmem:[#allocation16] sm:$0xff] %vm560, %v555
    // Predicated region
    $region78: #{block_forward.1} parent=1 // pred_check
      _
    $region79: #{block_forward.1} parent=1 // pred_check_branch
      %563 = sbr.rel (0) target = $region81
    $region80: #{block_forward.1} parent=1 // pred_region
      %s565 = ssub.s32 128, 128
      %566 = vsyncadd [#allocation4], %s565
      %s568 = sshll.u32 [#allocation16], 4
      %s569 = int_to_ptr.vmem [resolvable:$true] %s568
      %571 = dma.vmem_to_hbm [thread:$0]  %s569, 128, %s11, [#allocation4]
    $region81: #{block_forward.1} parent=1 // pred_fallthru
      _
    // Predicated region
    $region82: #{block_forward.1} parent=1 // pred_check
      _
    $region83: #{block_forward.1} parent=1 // pred_check_branch
      %573 = sbr.rel (0) target = $region85
    $region84: #{block_forward.1} parent=1 // pred_region
      %574 = dma.done [#allocation4], 128
    $region85: #{block_forward.1} parent=1 // pred_fallthru
      _
    %575 = vsyncpa [#allocation3], 1
    %576 = vsyncpa [#allocation6], 1
    %577 = vsyncpa [#allocation9], 1
    %578 = vsyncpa [#allocation12], 1
    %579 = vsyncpa [#allocation15], 1
    %580 = vsyncpa [#allocation4], 1

</llo_original>
